<compile_context>
chip_gen: v7x
topology: tpu7x:2x2x1
jax: 0.10.0
libtpu: 0.0.40
codegen_flags: <defaults>
</compile_context>

<pallas_src>
import math

import jax
import jax.numpy as jnp
from jax.experimental import pallas as pl
from jax.experimental.pallas import tpu as pltpu

_LANE = 128
_SUBLANE = 8


def _round_up(x, m):
    return ((x + m - 1) // m) * m


# ----------------------------------------------------------------------------
# Kernel
# ----------------------------------------------------------------------------
def value_net_kernel(x_ref, w1_ref, b1_ref, w2_ref, b2_ref, w3_ref, b3_ref,
                     out_ref):
    # Layer 1: Linear + ReLU (MXU matmul, f32 accumulation). If the state is
    # streamed as bf16 it is promoted to f32 here (weights stay f32).
    h1 = jnp.dot(x_ref[...], w1_ref[...], preferred_element_type=jnp.float32)
    h1 = jnp.maximum(h1 + b1_ref[...], 0.0)

    # Layer 2: Linear + ReLU. W2/b2 are zero-padded to a lane multiple (h1p),
    # so the extra columns of h2 are exactly relu(0) = 0.
    h2 = jnp.dot(h1, w2_ref[...], preferred_element_type=jnp.float32)
    h2 = jnp.maximum(h2 + b2_ref[...], 0.0)                      # (tb, h1p)

    # Output head Linear(hidden[-1], 1): elementwise multiply by the w3 row
    # (VPU, zero on padded columns), then ONE XLU transpose so the batch dim
    # lands on lanes, then a sublane reduction -> lane-dense (1, tb) result.
    pt = (h2 * w3_ref[...]).T                                    # (h1p, tb)
    v = jnp.sum(pt, axis=0, keepdims=True) + b3_ref[0]           # (1, tb)

    out_ref[...] = v.astype(out_ref.dtype)


# ----------------------------------------------------------------------------
# Tile selection (padding-aware VMEM budget)
# ----------------------------------------------------------------------------
def _pick_batch_tile(B, state_dim, h0, h1p, state_itemsize,
                     max_tb=2048, vmem_budget_bytes=24 * 1024 * 1024):
    """Largest 128-multiple batch tile whose (8,128)-padded footprint fits.

    Counts lane/sublane padding of every buffer. 24 MiB budget + 32 MiB
    explicit vmem_limit keeps headroom on v7x (64 MiB physical / 32 MiB
    default scoped) while still allowing large tiles on v5e/v6e.
    """
    sd_p = _round_up(state_dim, _LANE)
    h0_p = _round_up(h0, _LANE)
    # Resident weights/biases (constant index_map); assume the pipeline still
    # double-buffers them.
    w_bytes = 2 * 4 * (_round_up(state_dim, _SUBLANE) * h0_p   # W1
                       + _SUBLANE * h0_p                        # b1
                       + _round_up(h0, _SUBLANE) * h1p          # W2 (padded)
                       + 2 * _SUBLANE * h1p)                    # b2 + w3 row

    def tile_bytes(tb):
        return (2 * tb * sd_p * state_itemsize      # streamed state, double-buffered
                + 2 * _SUBLANE * tb * 4             # (1, tb) out block, double-buffered
                + 4 * tb * (h0_p + 3 * h1p))        # h1 / h2 / h2*w3 / transpose temps

    tb = _round_up(min(max_tb, _round_up(B, _LANE)), _LANE)
    while tb > _LANE and w_bytes + tile_bytes(tb) > vmem_budget_bytes:
        tb = _round_up(max(tb // 2, _LANE), _LANE)
    return tb


# ----------------------------------------------------------------------------
# Wrapper
# ----------------------------------------------------------------------------
def value_network_forward(state, params, *, block_b=None, use_bf16_state=False):
    """state: (B, state_dim) float32. Returns (B, 1) float32.

    block_b: optional batch-tile override (rounded to a multiple of 128).
    use_bf16_state: stream the state tiles as bfloat16 (weights stay f32,
      accumulation stays f32). Halves the only sizeable HBM read; slightly
      changes numerics, so off by default.
    """
    w1, b1, w2, b2, w3, b3 = params
    B, state_dim = state.shape
    h0 = w1.shape[1]
    h1 = w2.shape[1]
    h1p = _round_up(h1, _LANE)

    # One-time, tiny, weights-only zero-padding of the second hidden width to
    # a lane multiple. Padded h2 columns are relu(0)=0 and w3 is zero there,
    # so the head sum is unchanged; the in-kernel transpose then operates on a
    # fully (128,128)-aligned shape. (No padding of the streamed state.)
    if h1p != h1:
        w2 = jnp.pad(w2, ((0, 0), (0, h1p - h1)))
        b2 = jnp.pad(b2, ((0, 0), (0, h1p - h1)))
        w3 = jnp.pad(w3, ((0, 0), (0, h1p - h1)))

    if use_bf16_state:
        state = state.astype(jnp.bfloat16)

    if block_b is None:
        tb = _pick_batch_tile(B, state_dim, h0, h1p,
                              jnp.dtype(state.dtype).itemsize)
        # v7x has 2 TensorCores: make sure the "parallel" batch axis has at
        # least 2 blocks to shard. Harmless single extra step on v5e/v6e.
        if pl.cdiv(B, tb) < 2 and B > _LANE:
            tb = max(_LANE, _round_up(pl.cdiv(B, 2), _LANE))
    else:
        tb = _round_up(max(min(block_b, _round_up(B, _LANE)), _LANE), _LANE)

    num_blocks = pl.cdiv(B, tb)
    const2 = lambda i: (0, 0)   # same block every step -> stays resident in VMEM

    out = pl.pallas_call(
        value_net_kernel,
        out_shape=jax.ShapeDtypeStruct((1, B), jnp.float32),
        grid=(num_blocks,),
        in_specs=[
            pl.BlockSpec((tb, state_dim), lambda i: (i, 0)),     # state (streamed)
            pl.BlockSpec((state_dim, h0), const2),               # W1
            pl.BlockSpec((1, h0), const2),                       # b1
            pl.BlockSpec((h0, h1p), const2),                     # W2 (lane-padded)
            pl.BlockSpec((1, h1p), const2),                      # b2 (lane-padded)
            pl.BlockSpec((1, h1p), const2),                      # w3 row (lane-padded)
            pl.BlockSpec(memory_space=pltpu.MemorySpace.SMEM),   # b3 scalar
        ],
        out_specs=pl.BlockSpec((1, tb), lambda i: (0, i)),       # lane-dense output
        compiler_params=pltpu.CompilerParams(
            dimension_semantics=("parallel",),
            vmem_limit_bytes=32 * 1024 * 1024),
    )(state, w1, b1, w2, b2, w3, b3)

    return out.reshape(B, 1)


# ----------------------------------------------------------------------------
# Init + reference
# ----------------------------------------------------------------------------
def init_value_network_params(key, state_dim, hidden_size, init_w=0.003):
    """Deterministic init mirroring the PyTorch module's __init__.

    PyTorch nn.Linear default init: U(-1/sqrt(fan_in), 1/sqrt(fan_in)) for
    weight and bias; the final layer is overridden with U(-init_w, init_w).
    Weights stored transposed to (in, out); biases as (1, out) rows.
    W3 stored as a (1, hidden[-1]) row, b3 as a (1,) scalar (SMEM operand).
    """
    if isinstance(hidden_size, int):
        hidden_size = [hidden_size, hidden_size]
    h0, h1 = hidden_size[0], hidden_size[-1]
    k1, k2, k3, k4, k5, k6 = jax.random.split(key, 6)

    def unif(k, shape, bound):
        return jax.random.uniform(k, shape, jnp.float32, -bound, bound)

    bnd1 = 1.0 / math.sqrt(state_dim)
    bnd2 = 1.0 / math.sqrt(h0)

    w1 = unif(k1, (state_dim, h0), bnd1)
    b1 = unif(k2, (1, h0), bnd1)
    w2 = unif(k3, (h0, h1), bnd2)
    b2 = unif(k4, (1, h1), bnd2)
    w3 = unif(k5, (1, h1), init_w)   # final layer weight row: U(-init_w, init_w)
    b3 = unif(k6, (1,), init_w)      # final layer bias scalar
    return (w1, b1, w2, b2, w3, b3)


def value_network_ref(state, params):
    """Pure-JAX reference for correctness checking."""
    w1, b1, w2, b2, w3, b3 = params
    h = jnp.maximum(state @ w1 + b1, 0.0)
    h = jnp.maximum(h @ w2 + b2, 0.0)
    return jnp.sum(h * w3, axis=-1, keepdims=True) + b3[0]


# ----------------------------------------------------------------------------
# Smoke test
# ----------------------------------------------------------------------------
if __name__ == "__main__":
    key = jax.random.PRNGKey(0)
    k_params, k_state1, k_state2 = jax.random.split(key, 3)

    state_dim, hidden = 16, 32
    params = init_value_network_params(k_params, state_dim, hidden)

    # Odd batch: exercises the no-pad partial-last-block path (masked writes).
    batch = 300
    state = jax.random.normal(k_state1, (batch, state_dim), jnp.float32)
    out = jax.block_until_ready(value_network_forward(state, params))
    ref = value_network_ref(state, params)
    assert out.shape == (batch, 1), out.shape
    assert jnp.allclose(out, ref, atol=1e-5, rtol=1e-5)

    # Multi-block path (4 grid steps) with resident weights + lane-dense output.
    state2 = jax.random.normal(k_state2, (512, state_dim), jnp.float32)
    out2 = jax.block_until_ready(
        value_network_forward(state2, params, block_b=128))
    ref2 = value_network_ref(state2, params)
    assert out2.shape == (512, 1), out2.shape
    assert jnp.allclose(out2, ref2, atol=1e-5, rtol=1e-5)

    print("KERNEL_OK")
</pallas_src>

<mosaic_0001>
module attributes {stable_mosaic.version = 11 : i64} {
  func.func @value_net_kernel(%arg0: i32, %arg1: memref<256x16xf32, #tpu.memory_space<vmem>>, %arg2: memref<16x32xf32, #tpu.memory_space<vmem>>, %arg3: memref<1x32xf32, #tpu.memory_space<vmem>>, %arg4: memref<32x128xf32, #tpu.memory_space<vmem>>, %arg5: memref<1x128xf32, #tpu.memory_space<vmem>>, %arg6: memref<1x128xf32, #tpu.memory_space<vmem>>, %arg7: memref<1xf32, #tpu.memory_space<smem>>, %arg8: memref<1x256xf32, #tpu.memory_space<vmem>>) attributes {dimension_semantics = [#tpu.dimension_semantics<parallel>], iteration_bounds = array<i64: 2>, scalar_prefetch = 0 : i64, scratch_operands = 0 : i64, tpu.core_type = #tpu.core_type<tc>, window_params = [{transform_indices = @transform_0, window_bounds = array<i64: 256, 16>}, {pipeline_mode = #tpu.pipeline_mode<synchronous>, transform_indices = @transform_1, window_bounds = array<i64: 16, 32>}, {pipeline_mode = #tpu.pipeline_mode<synchronous>, transform_indices = @transform_2, window_bounds = array<i64: 1, 32>}, {pipeline_mode = #tpu.pipeline_mode<synchronous>, transform_indices = @transform_3, window_bounds = array<i64: 32, 128>}, {pipeline_mode = #tpu.pipeline_mode<synchronous>, transform_indices = @transform_4, window_bounds = array<i64: 1, 128>}, {pipeline_mode = #tpu.pipeline_mode<synchronous>, transform_indices = @transform_5, window_bounds = array<i64: 1, 128>}, {transform_indices = @transform_6, window_bounds = array<i64: 1>}, {transform_indices = @transform_7, window_bounds = array<i64: 1, 256>}]} {
    %c0 = arith.constant 0 : index
    %c0_0 = arith.constant 0 : index
    %0 = vector.load %arg1[%c0, %c0_0] : memref<256x16xf32, #tpu.memory_space<vmem>>, vector<256x16xf32>
    %c0_1 = arith.constant 0 : index
    %c0_2 = arith.constant 0 : index
    %1 = vector.load %arg2[%c0_1, %c0_2] : memref<16x32xf32, #tpu.memory_space<vmem>>, vector<16x32xf32>
    %cst = arith.constant dense<0.000000e+00> : vector<256x32xf32>
    %2 = tpu.matmul %0, %1, %cst {dimension_numbers = #tpu.dot_dimension_numbers<[1], [0], [0], [1], [0, 0, 1, 1], [], []>} : vector<256x16xf32>, vector<16x32xf32>, vector<256x32xf32> -> vector<256x32xf32>
    %c0_3 = arith.constant 0 : index
    %c0_4 = arith.constant 0 : index
    %3 = vector.load %arg3[%c0_3, %c0_4] : memref<1x32xf32, #tpu.memory_space<vmem>>, vector<1x32xf32>
    %4 = vector.broadcast %3 : vector<1x32xf32> to vector<256x32xf32>
    %5 = arith.addf %2, %4 : vector<256x32xf32>
    %cst_5 = arith.constant 0.000000e+00 : f32
    %6 = vector.broadcast %cst_5 : f32 to vector<256x32xf32>
    %7 = arith.maximumf %5, %6 : vector<256x32xf32>
    %c0_6 = arith.constant 0 : index
    %c0_7 = arith.constant 0 : index
    %8 = vector.load %arg4[%c0_6, %c0_7] : memref<32x128xf32, #tpu.memory_space<vmem>>, vector<32x128xf32>
    %cst_8 = arith.constant dense<0.000000e+00> : vector<256x128xf32>
    %9 = tpu.matmul %7, %8, %cst_8 {dimension_numbers = #tpu.dot_dimension_numbers<[1], [0], [0], [1], [0, 0, 1, 1], [], []>} : vector<256x32xf32>, vector<32x128xf32>, vector<256x128xf32> -> vector<256x128xf32>
    %c0_9 = arith.constant 0 : index
    %c0_10 = arith.constant 0 : index
    %10 = vector.load %arg5[%c0_9, %c0_10] : memref<1x128xf32, #tpu.memory_space<vmem>>, vector<1x128xf32>
    %11 = vector.broadcast %10 : vector<1x128xf32> to vector<256x128xf32>
    %12 = arith.addf %9, %11 : vector<256x128xf32>
    %cst_11 = arith.constant 0.000000e+00 : f32
    %13 = vector.broadcast %cst_11 : f32 to vector<256x128xf32>
    %14 = arith.maximumf %12, %13 : vector<256x128xf32>
    %c0_12 = arith.constant 0 : index
    %c0_13 = arith.constant 0 : index
    %15 = vector.load %arg6[%c0_12, %c0_13] : memref<1x128xf32, #tpu.memory_space<vmem>>, vector<1x128xf32>
    %16 = vector.broadcast %15 : vector<1x128xf32> to vector<256x128xf32>
    %17 = arith.mulf %14, %16 : vector<256x128xf32>
    %18 = tpu.transpose %17, [1, 0] : vector<256x128xf32> -> vector<128x256xf32>
    %cst_14 = arith.constant dense<0.000000e+00> : vector<256xf32>
    %19 = vector.multi_reduction <add>, %18, %cst_14 [0] : vector<128x256xf32> to vector<256xf32>
    %20 = vector.shape_cast %19 : vector<256xf32> to vector<1x256xf32>
    %c0_15 = arith.constant 0 : index
    %21 = memref.load %arg7[%c0_15] : memref<1xf32, #tpu.memory_space<smem>>
    %22 = vector.broadcast %21 : f32 to vector<1x256xf32>
    %23 = arith.addf %20, %22 : vector<1x256xf32>
    %c0_16 = arith.constant 0 : index
    %c0_17 = arith.constant 0 : index
    %24 = vector.load %arg8[%c0_16, %c0_17] : memref<1x256xf32, #tpu.memory_space<vmem>>, vector<1x256xf32>
    tpu.vector_store %arg8[%c0_16, %c0_17], %23 {strides = array<i32>} : memref<1x256xf32, #tpu.memory_space<vmem>>, vector<1x256xf32>,
    return
  }
  func.func @transform_0(%arg0: i32) -> (i32, i32) {
    %c0_i32 = arith.constant 0 : i32
    %c0_i32_0 = arith.constant 0 : i32
    return %arg0, %c0_i32 : i32, i32
  }
  func.func @transform_1(%arg0: i32) -> (i32, i32) {
    %c0_i32 = arith.constant 0 : i32
    %c0_i32_0 = arith.constant 0 : i32
    %c0_i32_1 = arith.constant 0 : i32
    return %c0_i32, %c0_i32_0 : i32, i32
  }
  func.func @transform_2(%arg0: i32) -> (i32, i32) {
    %c0_i32 = arith.constant 0 : i32
    %c0_i32_0 = arith.constant 0 : i32
    %c0_i32_1 = arith.constant 0 : i32
    return %c0_i32, %c0_i32_0 : i32, i32
  }
  func.func @transform_3(%arg0: i32) -> (i32, i32) {
    %c0_i32 = arith.constant 0 : i32
    %c0_i32_0 = arith.constant 0 : i32
    %c0_i32_1 = arith.constant 0 : i32
    return %c0_i32, %c0_i32_0 : i32, i32
  }
  func.func @transform_4(%arg0: i32) -> (i32, i32) {
    %c0_i32 = arith.constant 0 : i32
    %c0_i32_0 = arith.constant 0 : i32
    %c0_i32_1 = arith.constant 0 : i32
    return %c0_i32, %c0_i32_0 : i32, i32
  }
  func.func @transform_5(%arg0: i32) -> (i32, i32) {
    %c0_i32 = arith.constant 0 : i32
    %c0_i32_0 = arith.constant 0 : i32
    %c0_i32_1 = arith.constant 0 : i32
    return %c0_i32, %c0_i32_0 : i32, i32
  }
  func.func @transform_6(%arg0: i32) -> i32 {
    %c0_i32 = arith.constant 0 : i32
    %c0_i32_0 = arith.constant 0 : i32
    return %c0_i32 : i32
  }
  func.func @transform_7(%arg0: i32) -> (i32, i32) {
    %c0_i32 = arith.constant 0 : i32
    %c0_i32_0 = arith.constant 0 : i32
    return %c0_i32, %arg0 : i32, i32
  }
}

</mosaic_0001>

<llo_original>
// kernel: tpu_custom_call.1
$region0: #{tpu_custom_call.1}
  #allocation0 [shape = 'u32[]', space=smem, size = 0x4, offset = 0x4, fixed_abs, tag = 'smem constant byte address 0x4 - core index']
  #allocation1 [shape = 'u32[144,128]{1,0:T(1,128)}', space=vmem, size = 0x12000, scoped, tag = 'internal scratch']
  #allocation2 [shape = 'f32[1]{0:T(128)S(6)}', space=smem, size = 0x200, scoped, tag = 'scoped memory for tpu_custom_call.1']
  %s0 = inlined_call_operand.vmem [shape: f32[300,16], index: 0, kind: input, shape index: {}]
  %s1 = inlined_call_operand.vmem [shape: f32[16,32], index: 1, kind: input, shape index: {}]
  %s2 = inlined_call_operand.vmem [shape: f32[1,32], index: 2, kind: input, shape index: {}]
  %s3 = inlined_call_operand.vmem [shape: f32[32,128], index: 3, kind: input, shape index: {}]
  %s4 = inlined_call_operand.vmem [shape: f32[1,128], index: 4, kind: input, shape index: {}]
  %s5 = inlined_call_operand.vmem [shape: f32[1,128], index: 5, kind: input, shape index: {}]
  %s6 = inlined_call_operand.<no memory space> [shape: f32[1], index: 6, kind: input, shape index: {}]
  %s7 = inlined_call_operand.hbm [shape: f32[1,300], index: 7, kind: output, shape index: {}]
  %s8 = sld [smem:[#allocation0]]
  $region61: #{tpu_custom_call.1} parent=0
    _
  %s10 = ssub.s32 1, %s8
  %s11 = scalar_select 0, %s10, %s8
  %12 = sst [smem:[#allocation2]] %s6
  $region1: #{tpu_custom_call.1} parent=0
    #allocation3 [shape = 'u8[2048]{0}', space=vmem, size = 0x800, scoped, tag = 'output window, operand 0']
    #allocation4 [shape = 's32[2]{0}', space=sflag, size = 0x8, scoped, tag = 'scoped memory for tpu_custom_call.1']
    %13 = vsyncpa [#allocation4], 0
    %s14 = scalar_lea.sflag [#allocation4], 1
    %15 = vsyncpa %s14, 0
    loop: start=0, step=1, limit=4
    $region2: #{tpu_custom_call.1} parent=1 // loop_pre_header
      _
    $region3: #{tpu_custom_call.1} parent=1 // loop_header
      %s17 = sphi 0, %s21
      %p18 = scmp.ge.s32.totalorder %s17, 4
      %s27 = sphi 0, %s29
      %s30 = sphi 0, %s27
      %s31 = sphi 0, %s30
      %s47 = sphi 0, %s31
      %s51 = sphi 0, %s51
      %s53 = sphi 0, %s51
      %s54 = sphi 0, %s53
      %s68 = sphi 0, %s54
      %s72 = sphi 0, %s72
      %s74 = sphi 0, %s72
      %s75 = sphi 0, %s74
      %s89 = sphi 0, %s75
      %s93 = sphi 0, %s93
      %s95 = sphi 0, %s93
      %s96 = sphi 0, %s95
      %s110 = sphi 0, %s96
      %s114 = sphi 0, %s114
      %s116 = sphi 0, %s114
      %s117 = sphi 0, %s116
      %s131 = sphi 0, %s117
      %s135 = sphi 0, %s135
      %s137 = sphi 0, %s135
      %s138 = sphi 0, %s137
      %s152 = sphi 0, %s138
      %s156 = sphi 0, %s156
      %s158 = sphi 0, %s156
      %s159 = sphi 0, %s158
      %s173 = sphi 0, %s159
      %s179 = sphi 0, %s181
      %s182 = sphi 0, %s179
      %s183 = sphi 0, %s182
      %s199 = sphi 0, %s183
    $region4: #{tpu_custom_call.1} parent=1 // loop_header_branch
      %20 = sbr.rel (%p18) target = $region8
    $region5: #{tpu_custom_call.1} parent=1 // loop_body
      %s22 = ssub.s32 %s17, 1
      %s23 = ssub.s32 %s17, 2
      %s24 = sadd.s32 %s17, 1
      %s25 = ssub.s32 %s17, %s24
      %p26 = scmp.eq.s32.totalorder %s25, 0
      %s28 = sadd.s32 %s27, 1
      %s29 = scalar_select %p26, %s27, %s28
      %p32 = pneg %p26
      %p33 = scmp.eq.s32.totalorder %s17, 1
      %p34 = por %p32, %p33
      %p35 = scmp.ne.s32.totalorder %s27, %s30
      %p36 = scmp.eq.s32.totalorder %s17, 0
      %p37 = por %p35, %p36
      %p38 = scmp.ne.s32.totalorder %s27, %s30
      %p39 = scmp.eq.s32.totalorder %s22, 1
      %p40 = por %p38, %p39
      %p41 = scmp.ne.s32.totalorder %s30, %s31
      %p42 = scmp.eq.s32.totalorder %s22, 0
      %p43 = por %p41, %p42
      %p44 = scmp.ne.s32.totalorder %s30, %s31
      %p45 = scmp.eq.s32.totalorder %s23, 1
      %p46 = por %p44, %p45
      %p48 = scmp.ne.s32.totalorder %s31, %s47
      %p49 = scmp.eq.s32.totalorder %s23, 0
      %p50 = por %p48, %p49
      %s52 = sadd.s32 %s51, 1
      %p55 = scmp.eq.s32.totalorder %s17, 1
      %p56 = scmp.ne.s32.totalorder %s51, %s53
      %p57 = scmp.eq.s32.totalorder %s17, 0
      %p58 = por %p56, %p57
      %p59 = scmp.ne.s32.totalorder %s51, %s53
      %p60 = scmp.eq.s32.totalorder %s22, 1
      %p61 = por %p59, %p60
      %p62 = scmp.ne.s32.totalorder %s53, %s54
      %p63 = scmp.eq.s32.totalorder %s22, 0
      %p64 = por %p62, %p63
      %p65 = scmp.ne.s32.totalorder %s53, %s54
      %p66 = scmp.eq.s32.totalorder %s23, 1
      %p67 = por %p65, %p66
      %p69 = scmp.ne.s32.totalorder %s54, %s68
      %p70 = scmp.eq.s32.totalorder %s23, 0
      %p71 = por %p69, %p70
      %s73 = sadd.s32 %s72, 1
      %p76 = scmp.eq.s32.totalorder %s17, 1
      %p77 = scmp.ne.s32.totalorder %s72, %s74
      %p78 = scmp.eq.s32.totalorder %s17, 0
      %p79 = por %p77, %p78
      %p80 = scmp.ne.s32.totalorder %s72, %s74
      %p81 = scmp.eq.s32.totalorder %s22, 1
      %p82 = por %p80, %p81
      %p83 = scmp.ne.s32.totalorder %s74, %s75
      %p84 = scmp.eq.s32.totalorder %s22, 0
      %p85 = por %p83, %p84
      %p86 = scmp.ne.s32.totalorder %s74, %s75
      %p87 = scmp.eq.s32.totalorder %s23, 1
      %p88 = por %p86, %p87
      %p90 = scmp.ne.s32.totalorder %s75, %s89
      %p91 = scmp.eq.s32.totalorder %s23, 0
      %p92 = por %p90, %p91
      %s94 = sadd.s32 %s93, 1
      %p97 = scmp.eq.s32.totalorder %s17, 1
      %p98 = scmp.ne.s32.totalorder %s93, %s95
      %p99 = scmp.eq.s32.totalorder %s17, 0
      %p100 = por %p98, %p99
      %p101 = scmp.ne.s32.totalorder %s93, %s95
      %p102 = scmp.eq.s32.totalorder %s22, 1
      %p103 = por %p101, %p102
      %p104 = scmp.ne.s32.totalorder %s95, %s96
      %p105 = scmp.eq.s32.totalorder %s22, 0
      %p106 = por %p104, %p105
      %p107 = scmp.ne.s32.totalorder %s95, %s96
      %p108 = scmp.eq.s32.totalorder %s23, 1
      %p109 = por %p107, %p108
      %p111 = scmp.ne.s32.totalorder %s96, %s110
      %p112 = scmp.eq.s32.totalorder %s23, 0
      %p113 = por %p111, %p112
      %s115 = sadd.s32 %s114, 1
      %p118 = scmp.eq.s32.totalorder %s17, 1
      %p119 = scmp.ne.s32.totalorder %s114, %s116
      %p120 = scmp.eq.s32.totalorder %s17, 0
      %p121 = por %p119, %p120
      %p122 = scmp.ne.s32.totalorder %s114, %s116
      %p123 = scmp.eq.s32.totalorder %s22, 1
      %p124 = por %p122, %p123
      %p125 = scmp.ne.s32.totalorder %s116, %s117
      %p126 = scmp.eq.s32.totalorder %s22, 0
      %p127 = por %p125, %p126
      %p128 = scmp.ne.s32.totalorder %s116, %s117
      %p129 = scmp.eq.s32.totalorder %s23, 1
      %p130 = por %p128, %p129
      %p132 = scmp.ne.s32.totalorder %s117, %s131
      %p133 = scmp.eq.s32.totalorder %s23, 0
      %p134 = por %p132, %p133
      %s136 = sadd.s32 %s135, 1
      %p139 = scmp.eq.s32.totalorder %s17, 1
      %p140 = scmp.ne.s32.totalorder %s135, %s137
      %p141 = scmp.eq.s32.totalorder %s17, 0
      %p142 = por %p140, %p141
      %p143 = scmp.ne.s32.totalorder %s135, %s137
      %p144 = scmp.eq.s32.totalorder %s22, 1
      %p145 = por %p143, %p144
      %p146 = scmp.ne.s32.totalorder %s137, %s138
      %p147 = scmp.eq.s32.totalorder %s22, 0
      %p148 = por %p146, %p147
      %p149 = scmp.ne.s32.totalorder %s137, %s138
      %p150 = scmp.eq.s32.totalorder %s23, 1
      %p151 = por %p149, %p150
      %p153 = scmp.ne.s32.totalorder %s138, %s152
      %p154 = scmp.eq.s32.totalorder %s23, 0
      %p155 = por %p153, %p154
      %s157 = sadd.s32 %s156, 1
      %p160 = scmp.eq.s32.totalorder %s17, 1
      %p161 = scmp.ne.s32.totalorder %s156, %s158
      %p162 = scmp.eq.s32.totalorder %s17, 0
      %p163 = por %p161, %p162
      %p164 = scmp.ne.s32.totalorder %s156, %s158
      %p165 = scmp.eq.s32.totalorder %s22, 1
      %p166 = por %p164, %p165
      %p167 = scmp.ne.s32.totalorder %s158, %s159
      %p168 = scmp.eq.s32.totalorder %s22, 0
      %p169 = por %p167, %p168
      %p170 = scmp.ne.s32.totalorder %s158, %s159
      %p171 = scmp.eq.s32.totalorder %s23, 1
      %p172 = por %p170, %p171
      %p174 = scmp.ne.s32.totalorder %s159, %s173
      %p175 = scmp.eq.s32.totalorder %s23, 0
      %p176 = por %p174, %p175
      %s177 = ssub.s32 %s17, %s24
      %p178 = scmp.eq.s32.totalorder %s177, 0
      %s180 = sadd.s32 %s179, 1
      %s181 = scalar_select %p178, %s179, %s180
      %p184 = pneg %p178
      %p185 = scmp.eq.s32.totalorder %s17, 1
      %p186 = por %p184, %p185
      %p187 = scmp.ne.s32.totalorder %s179, %s182
      %p188 = scmp.eq.s32.totalorder %s17, 0
      %p189 = por %p187, %p188
      %p190 = scmp.ne.s32.totalorder %s179, %s182
      %p191 = scmp.eq.s32.totalorder %s22, 1
      %p192 = por %p190, %p191
      %p193 = scmp.ne.s32.totalorder %s182, %s183
      %p194 = scmp.eq.s32.totalorder %s22, 0
      %p195 = por %p193, %p194
      %p196 = scmp.ne.s32.totalorder %s182, %s183
      %p197 = scmp.eq.s32.totalorder %s23, 1
      %p198 = por %p196, %p197
      %p200 = scmp.ne.s32.totalorder %s183, %s199
      %p201 = scmp.eq.s32.totalorder %s23, 0
      %p202 = por %p200, %p201
      %p203 = scmp.le.s32.totalorder 1, %s17
      %p204 = scmp.lt.s32.totalorder %s17, 3
      %p205 = pnand %p203, %p204
      %p206 = pneg %p205
      // Predicated region
      $region9: #{tpu_custom_call.1} parent=5 // pred_check
        _
      $region10: #{tpu_custom_call.1} parent=5 // pred_check_branch
        %208 = sbr.rel (%p205) target = $region12
      $region11: #{tpu_custom_call.1} parent=5 // pred_region
        %s209 = ssub.s32 %s17, 1
        // Predicated region
        $region13: #{tpu_custom_call.1} parent=11 // pred_check
          %p210 = pneg %p64
        $region14: #{tpu_custom_call.1} parent=11 // pred_check_branch
          %212 = sbr.rel (%p210) target = $region16
        $region15: #{tpu_custom_call.1} parent=11 // pred_region
          _
        $region16: #{tpu_custom_call.1} parent=11 // pred_fallthru
          _
        // Predicated region
        $region17: #{tpu_custom_call.1} parent=11 // pred_check
          %p213 = pneg %p85
        $region18: #{tpu_custom_call.1} parent=11 // pred_check_branch
          %215 = sbr.rel (%p213) target = $region20
        $region19: #{tpu_custom_call.1} parent=11 // pred_region
          _
        $region20: #{tpu_custom_call.1} parent=11 // pred_fallthru
          _
        // Predicated region
        $region21: #{tpu_custom_call.1} parent=11 // pred_check
          %p216 = pneg %p106
        $region22: #{tpu_custom_call.1} parent=11 // pred_check_branch
          %218 = sbr.rel (%p216) target = $region24
        $region23: #{tpu_custom_call.1} parent=11 // pred_region
          _
        $region24: #{tpu_custom_call.1} parent=11 // pred_fallthru
          _
        // Predicated region
        $region25: #{tpu_custom_call.1} parent=11 // pred_check
          %p219 = pneg %p127
        $region26: #{tpu_custom_call.1} parent=11 // pred_check_branch
          %221 = sbr.rel (%p219) target = $region28
        $region27: #{tpu_custom_call.1} parent=11 // pred_region
          _
        $region28: #{tpu_custom_call.1} parent=11 // pred_fallthru
          _
        // Predicated region
        $region29: #{tpu_custom_call.1} parent=11 // pred_check
          %p222 = pneg %p148
        $region30: #{tpu_custom_call.1} parent=11 // pred_check_branch
          %224 = sbr.rel (%p222) target = $region32
        $region31: #{tpu_custom_call.1} parent=11 // pred_region
          _
        $region32: #{tpu_custom_call.1} parent=11 // pred_fallthru
          _
        // Predicated region
        $region33: #{tpu_custom_call.1} parent=11 // pred_check
          %p225 = pneg %p169
        $region34: #{tpu_custom_call.1} parent=11 // pred_check_branch
          %227 = sbr.rel (%p225) target = $region36
        $region35: #{tpu_custom_call.1} parent=11 // pred_region
          _
        $region36: #{tpu_custom_call.1} parent=11 // pred_fallthru
          _
      $region12: #{tpu_custom_call.1} parent=5 // pred_fallthru
        _
      %p228 = scmp.lt.s32.totalorder %s17, 2
      // Predicated region
      $region37: #{tpu_custom_call.1} parent=5 // pred_check
        %p229 = pneg %p228
      $region38: #{tpu_custom_call.1} parent=5 // pred_check_branch
        %231 = sbr.rel (%p229) target = $region40
      $region39: #{tpu_custom_call.1} parent=5 // pred_region
        // Predicated region
        $region41: #{tpu_custom_call.1} parent=39 // pred_check
          %p232 = pneg %p37
        $region42: #{tpu_custom_call.1} parent=39 // pred_check_branch
          %234 = sbr.rel (%p232) target = $region44
        $region43: #{tpu_custom_call.1} parent=39 // pred_region
          %s235 = smul.u32 32, %s17
          %s236 = ssub.s32 38, %s235
          %p237 = scmp.lt.s32.totalorder %s236, 32
          %s238 = scalar_select %p237, %s236, 32
          %s239 = smul.u32 128, %s238
          %p240 = scmp.lt.s32.totalorder %s235, 37
          %s241 = scalar_select %p240, %s235, 37
          %s242 = smul.addr %s241, 8
          %s243 = scalar_lea.vmem %s0, %s242
          %s244 = smul.u32 32, %s17
          %s245 = ssub.s32 38, %s244
          %p246 = scmp.lt.s32.totalorder %s245, 32
          %s247 = scalar_select %p246, %s245, 32
          %s248 = smul.u32 128, %s247
        $region44: #{tpu_custom_call.1} parent=39 // pred_fallthru
          _
      $region40: #{tpu_custom_call.1} parent=5 // pred_fallthru
        _
      %p249 = scmp.le.s32.totalorder 1, %s17
      %p250 = scmp.lt.s32.totalorder %s17, 3
      %p251 = pnand %p249, %p250
      %p252 = pneg %p251
      // Predicated region
      $region45: #{tpu_custom_call.1} parent=5 // pred_check
        _
      $region46: #{tpu_custom_call.1} parent=5 // pred_check_branch
        %254 = sbr.rel (%p251) target = $region48
      $region47: #{tpu_custom_call.1} parent=5 // pred_region
        %s255 = ssub.s32 %s17, 1
        %s256 = smul.u32 32, %s22
        %s257 = ssub.s32 38, %s256
        %p258 = scmp.lt.s32.totalorder %s257, 32
        %s259 = scalar_select %p258, %s257, 32
        %s260 = smul.u32 128, %s259
        %p261 = scmp.lt.s32.totalorder %s256, 37
        %s262 = scalar_select %p261, %s256, 37
        %s263 = smul.addr %s262, 8
        %s264 = scalar_lea.vmem %s0, %s263
        %p265 = pneg %p43
        %p266 = pneg %p40
        %p267 = pneg %p64
        %p268 = pneg %p61
        %p269 = pneg %p85
        %p270 = pneg %p82
        %p271 = pneg %p106
        %p272 = pneg %p103
        %p273 = pneg %p127
        %p274 = pneg %p124
        %p275 = pneg %p148
        %p276 = pneg %p145
        %p277 = pneg %p169
        %p278 = pneg %p166
        %p279 = pneg %p195
        %p280 = pneg %p192
        %s281 = sand.u32 %s182, 1
        %s282 = scalar_lea.sflag [#allocation4], %s281
        %s283 = sand.u32 %s182, 1
        %s284 = smul.addr %s283, 2
        %s285 = scalar_lea.vmem [#allocation3], %s284
        %s286 = smul.u32 32, %s22
        %s287 = ssub.s32 38, %s286
        %p288 = scmp.lt.s32.totalorder %s287, 32
        %s289 = scalar_select %p288, %s287, 32
        %s290 = smul.u32 128, %s289
        %p291 = scmp.lt.s32.totalorder %s286, 37
        %s292 = scalar_select %p291, %s286, 37
        %s293 = smul.addr %s292, 8
        %s294 = scalar_lea.vmem %s0, %s293
        %s295 = smul.u32 32, %s22
        %s296 = ssub.s32 38, %s295
        %p297 = scmp.lt.s32.totalorder %s296, 32
        %s298 = scalar_select %p297, %s296, 32
        %s299 = smul.u32 128, %s298
        %s300 = smul.u32 2, %s22
        %s301 = ssub.s32 3, %s300
        %p302 = scmp.lt.s32.totalorder %s301, 2
        %s303 = scalar_select %p302, %s301, 2
        %s304 = smul.u32 16, %s303
        %v305 = vld [vmem:[%s294] sm:$0xff]
        %v306 = vld [vmem:[%s294 + $0x8] sm:$0xff]
        %v307 = vld [vmem:[%s294 + $0x10] sm:$0xff]
        %v308 = vld [vmem:[%s294 + $0x18] sm:$0xff]
        %v309 = vld [vmem:[%s294 + $0x20] sm:$0xff]
        %v310 = vld [vmem:[%s294 + $0x28] sm:$0xff]
        %v311 = vld [vmem:[%s294 + $0x30] sm:$0xff]
        %v312 = vld [vmem:[%s294 + $0x38] sm:$0xff]
        %v313 = vld [vmem:[%s294 + $0x40] sm:$0xff]
        %v314 = vld [vmem:[%s294 + $0x48] sm:$0xff]
        %v315 = vld [vmem:[%s294 + $0x50] sm:$0xff]
        %v316 = vld [vmem:[%s294 + $0x58] sm:$0xff]
        %v317 = vld [vmem:[%s294 + $0x60] sm:$0xff]
        %v318 = vld [vmem:[%s294 + $0x68] sm:$0xff]
        %v319 = vld [vmem:[%s294 + $0x70] sm:$0xff]
        %v320 = vld [vmem:[%s294 + $0x78] sm:$0xff]
        %v321 = vld [vmem:[%s294 + $0x80] sm:$0xff]
        %v322 = vld [vmem:[%s294 + $0x88] sm:$0xff]
        %v323 = vld [vmem:[%s294 + $0x90] sm:$0xff]
        %v324 = vld [vmem:[%s294 + $0x98] sm:$0xff]
        %v325 = vld [vmem:[%s294 + $0xa0] sm:$0xff]
        %v326 = vld [vmem:[%s294 + $0xa8] sm:$0xff]
        %v327 = vld [vmem:[%s294 + $0xb0] sm:$0xff]
        %v328 = vld [vmem:[%s294 + $0xb8] sm:$0xff]
        %v329 = vld [vmem:[%s294 + $0xc0] sm:$0xff]
        %v330 = vld [vmem:[%s294 + $0xc8] sm:$0xff]
        %v331 = vld [vmem:[%s294 + $0xd0] sm:$0xff]
        %v332 = vld [vmem:[%s294 + $0xd8] sm:$0xff]
        %v333 = vld [vmem:[%s294 + $0xe0] sm:$0xff]
        %v334 = vld [vmem:[%s294 + $0xe8] sm:$0xff]
        %v335 = vld [vmem:[%s294 + $0xf0] sm:$0xff]
        %v336 = vld [vmem:[%s294 + $0xf8] sm:$0xff]
        %v337 = vld [vmem:[%s1] sm:$0xff]
        %v338 = vld [vmem:[%s1 + $0x8] sm:$0xff]
        %v339 = vld [vmem:[%s2] sm:$0x1]
        %v341 = vlaneseq
        %v342 = vshrl.u32 %v341, 7
        %v343 = vsub.s32 0, %v342
        %v344 = vrot.slane %v339, %v343
        %vm346 = vcmask 130048
        %v348 = vsel %vm346, %v305, 0
        %v351 = vsel %vm346, %v306, 0
        %v354 = vsel %vm346, %v307, 0
        %v357 = vsel %vm346, %v308, 0
        %v360 = vsel %vm346, %v309, 0
        %v363 = vsel %vm346, %v310, 0
        %v366 = vsel %vm346, %v311, 0
        %v369 = vsel %vm346, %v312, 0
        %v372 = vsel %vm346, %v313, 0
        %v375 = vsel %vm346, %v314, 0
        %v378 = vsel %vm346, %v315, 0
        %v381 = vsel %vm346, %v316, 0
        %v384 = vsel %vm346, %v317, 0
        %v387 = vsel %vm346, %v318, 0
        %v390 = vsel %vm346, %v319, 0
        %v393 = vsel %vm346, %v320, 0
        %v396 = vsel %vm346, %v321, 0
        %v399 = vsel %vm346, %v322, 0
        %v402 = vsel %vm346, %v323, 0
        %v405 = vsel %vm346, %v324, 0
        %v408 = vsel %vm346, %v325, 0
        %v411 = vsel %vm346, %v326, 0
        %v414 = vsel %vm346, %v327, 0
        %v417 = vsel %vm346, %v328, 0
        %v420 = vsel %vm346, %v329, 0
        %v423 = vsel %vm346, %v330, 0
        %v426 = vsel %vm346, %v331, 0
        %v429 = vsel %vm346, %v332, 0
        %v432 = vsel %vm346, %v333, 0
        %v435 = vsel %vm346, %v334, 0
        %v438 = vsel %vm346, %v335, 0
        %v441 = vsel %vm346, %v336, 0
        %443 = vmatprep.subr.mxu0 0.0
        %444 = vmatpush1.msra.mxu0 %v337
        %445 = vmatprep.subr.mxu0 0.0
        %446 = vmatpush1.msra.mxu0 %v338
        %447 = vmatprep.subr.mxu0 0.0
        %448 = vmatpush1.msra.mxu0 0.0
        %449 = vmatprep.subr.mxu0 0.0
        %450 = vmatpush1.msra.mxu0 0.0
        %451 = vmatprep.subr.mxu0 0.0
        %452 = vmatpush1.msra.mxu0 0.0
        %453 = vmatprep.subr.mxu0 0.0
        %454 = vmatpush1.msra.mxu0 0.0
        %455 = vmatprep.subr.mxu0 0.0
        %456 = vmatpush1.msra.mxu0 0.0
        %457 = vmatprep.subr.mxu0 0.0
        %458 = vmatpush1.msra.mxu0 0.0
        %459 = vmatprep.subr.mxu0 0.0
        %460 = vmatpush1.msra.mxu0 0.0
        %461 = vmatprep.subr.mxu0 0.0
        %462 = vmatpush1.msra.mxu0 0.0
        %463 = vmatprep.subr.mxu0 0.0
        %464 = vmatpush1.msra.mxu0 0.0
        %465 = vmatprep.subr.mxu0 0.0
        %466 = vmatpush1.msra.mxu0 0.0
        %467 = vmatprep.subr.mxu0 0.0
        %468 = vmatpush1.msra.mxu0 0.0
        %469 = vmatprep.subr.mxu0 0.0
        %470 = vmatpush1.msra.mxu0 0.0
        %471 = vmatprep.subr.mxu0 0.0
        %472 = vmatpush1.msra.mxu0 0.0
        %473 = vmatprep.subr.mxu0 0.0
        %474 = vmatpush1.msra.mxu0 0.0
        %475 = vmatprep.subr.mxu0 0.0
        %476 = vmatpush1.msra.mxu0 0.0
        %477 = vmatprep.subr.mxu0 0.0
        %478 = vmatpush1.msra.mxu0 0.0
        %479 = vmatprep.subr.mxu0 0.0
        %480 = vmatpush1.msra.mxu0 0.0
        %481 = vmatprep.subr.mxu0 0.0
        %482 = vmatpush1.msra.mxu0 0.0
        %483 = vmatprep.subr.mxu0 0.0
        %484 = vmatpush1.msra.mxu0 0.0
        %485 = vmatprep.subr.mxu0 0.0
        %486 = vmatpush1.msra.mxu0 0.0
        %487 = vmatprep.subr.mxu0 0.0
        %488 = vmatpush1.msra.mxu0 0.0
        %489 = vmatprep.subr.mxu0 0.0
        %490 = vmatpush1.msra.mxu0 0.0
        %491 = vmatprep.subr.mxu0 0.0
        %492 = vmatpush1.msra.mxu0 0.0
        %493 = vmatprep.subr.mxu0 0.0
        %494 = vmatpush1.msra.mxu0 0.0
        %495 = vmatprep.subr.mxu0 0.0
        %496 = vmatpush1.msra.mxu0 0.0
        %497 = vmatprep.subr.mxu0 0.0
        %498 = vmatpush1.msra.mxu0 0.0
        %499 = vmatprep.subr.mxu0 0.0
        %500 = vmatpush1.msra.mxu0 0.0
        %501 = vmatprep.subr.mxu0 0.0
        %502 = vmatpush1.msra.mxu0 0.0
        %503 = vmatprep.subr.mxu0 0.0
        %504 = vmatpush1.msra.mxu0 0.0
        %505 = vmatprep.subr.mxu0 0.0
        %506 = vmatpush1.msra.mxu0 0.0
        %507 = vmatprep.mubr.f32.mxu0 0.0
        %508 = vmatmul.mubr.f32.gmra.mrb[0].mxu0 %v348
        %v509 = vpop.f32.mrb[0].mxu0
        %v510 = vadd.f32 %v344, %v509
        %v511 = vpop.f32.mrb[0].mxu0
        %512 = vmatprep.mubr.f32.mxu0 0.0
        %513 = vmatmul.mubr.f32.gmra.mrb[0].mxu0 %v351
        %v514 = vpop.f32.mrb[0].mxu0
        %v515 = vadd.f32 %v344, %v514
        %v516 = vpop.f32.mrb[0].mxu0
        %517 = vmatprep.mubr.f32.mxu0 0.0
        %518 = vmatmul.mubr.f32.gmra.mrb[0].mxu0 %v354
        %v519 = vpop.f32.mrb[0].mxu0
        %v520 = vadd.f32 %v344, %v519
        %v521 = vpop.f32.mrb[0].mxu0
        %522 = vmatprep.mubr.f32.mxu0 0.0
        %523 = vmatmul.mubr.f32.gmra.mrb[0].mxu0 %v357
        %v524 = vpop.f32.mrb[0].mxu0
        %v525 = vadd.f32 %v344, %v524
        %v526 = vpop.f32.mrb[0].mxu0
        %527 = vmatprep.mubr.f32.mxu0 0.0
        %528 = vmatmul.mubr.f32.gmra.mrb[0].mxu0 %v360
        %v529 = vpop.f32.mrb[0].mxu0
        %v530 = vadd.f32 %v344, %v529
        %v531 = vpop.f32.mrb[0].mxu0
        %532 = vmatprep.mubr.f32.mxu0 0.0
        %533 = vmatmul.mubr.f32.gmra.mrb[0].mxu0 %v363
        %v534 = vpop.f32.mrb[0].mxu0
        %v535 = vadd.f32 %v344, %v534
        %v536 = vpop.f32.mrb[0].mxu0
        %537 = vmatprep.mubr.f32.mxu0 0.0
        %538 = vmatmul.mubr.f32.gmra.mrb[0].mxu0 %v366
        %v539 = vpop.f32.mrb[0].mxu0
        %v540 = vadd.f32 %v344, %v539
        %v541 = vpop.f32.mrb[0].mxu0
        %542 = vmatprep.mubr.f32.mxu0 0.0
        %543 = vmatmul.mubr.f32.gmra.mrb[0].mxu0 %v369
        %v544 = vpop.f32.mrb[0].mxu0
        %v545 = vadd.f32 %v344, %v544
        %v546 = vpop.f32.mrb[0].mxu0
        %547 = vmatprep.mubr.f32.mxu0 0.0
        %548 = vmatmul.mubr.f32.gmra.mrb[0].mxu0 %v372
        %v549 = vpop.f32.mrb[0].mxu0
        %v550 = vadd.f32 %v344, %v549
        %v551 = vpop.f32.mrb[0].mxu0
        %552 = vmatprep.mubr.f32.mxu0 0.0
        %553 = vmatmul.mubr.f32.gmra.mrb[0].mxu0 %v375
        %v554 = vpop.f32.mrb[0].mxu0
        %v555 = vadd.f32 %v344, %v554
        %v556 = vpop.f32.mrb[0].mxu0
        %557 = vmatprep.mubr.f32.mxu0 0.0
        %558 = vmatmul.mubr.f32.gmra.mrb[0].mxu0 %v378
        %v559 = vpop.f32.mrb[0].mxu0
        %v560 = vadd.f32 %v344, %v559
        %v561 = vpop.f32.mrb[0].mxu0
        %562 = vmatprep.mubr.f32.mxu0 0.0
        %563 = vmatmul.mubr.f32.gmra.mrb[0].mxu0 %v381
        %v564 = vpop.f32.mrb[0].mxu0
        %v565 = vadd.f32 %v344, %v564
        %v566 = vpop.f32.mrb[0].mxu0
        %567 = vmatprep.mubr.f32.mxu0 0.0
        %568 = vmatmul.mubr.f32.gmra.mrb[0].mxu0 %v384
        %v569 = vpop.f32.mrb[0].mxu0
        %v570 = vadd.f32 %v344, %v569
        %v571 = vpop.f32.mrb[0].mxu0
        %572 = vmatprep.mubr.f32.mxu0 0.0
        %573 = vmatmul.mubr.f32.gmra.mrb[0].mxu0 %v387
        %v574 = vpop.f32.mrb[0].mxu0
        %v575 = vadd.f32 %v344, %v574
        %v576 = vpop.f32.mrb[0].mxu0
        %577 = vmatprep.mubr.f32.mxu0 0.0
        %578 = vmatmul.mubr.f32.gmra.mrb[0].mxu0 %v390
        %v579 = vpop.f32.mrb[0].mxu0
        %v580 = vadd.f32 %v344, %v579
        %v581 = vpop.f32.mrb[0].mxu0
        %582 = vmatprep.mubr.f32.mxu0 0.0
        %583 = vmatmul.mubr.f32.gmra.mrb[0].mxu0 %v393
        %v584 = vpop.f32.mrb[0].mxu0
        %v585 = vadd.f32 %v344, %v584
        %v586 = vpop.f32.mrb[0].mxu0
        %587 = vmatprep.mubr.f32.mxu0 0.0
        %588 = vmatmul.mubr.f32.gmra.mrb[0].mxu0 %v396
        %v589 = vpop.f32.mrb[0].mxu0
        %v590 = vadd.f32 %v344, %v589
        %v591 = vpop.f32.mrb[0].mxu0
        %592 = vmatprep.mubr.f32.mxu0 0.0
        %593 = vmatmul.mubr.f32.gmra.mrb[0].mxu0 %v399
        %v594 = vpop.f32.mrb[0].mxu0
        %v595 = vadd.f32 %v344, %v594
        %v596 = vpop.f32.mrb[0].mxu0
        %597 = vmatprep.mubr.f32.mxu0 0.0
        %598 = vmatmul.mubr.f32.gmra.mrb[0].mxu0 %v402
        %v599 = vpop.f32.mrb[0].mxu0
        %v600 = vadd.f32 %v344, %v599
        %v601 = vpop.f32.mrb[0].mxu0
        %602 = vmatprep.mubr.f32.mxu0 0.0
        %603 = vmatmul.mubr.f32.gmra.mrb[0].mxu0 %v405
        %v604 = vpop.f32.mrb[0].mxu0
        %v605 = vadd.f32 %v344, %v604
        %v606 = vpop.f32.mrb[0].mxu0
        %607 = vmatprep.mubr.f32.mxu0 0.0
        %608 = vmatmul.mubr.f32.gmra.mrb[0].mxu0 %v408
        %v609 = vpop.f32.mrb[0].mxu0
        %v610 = vadd.f32 %v344, %v609
        %v611 = vpop.f32.mrb[0].mxu0
        %612 = vmatprep.mubr.f32.mxu0 0.0
        %613 = vmatmul.mubr.f32.gmra.mrb[0].mxu0 %v411
        %v614 = vpop.f32.mrb[0].mxu0
        %v615 = vadd.f32 %v344, %v614
        %v616 = vpop.f32.mrb[0].mxu0
        %617 = vmatprep.mubr.f32.mxu0 0.0
        %618 = vmatmul.mubr.f32.gmra.mrb[0].mxu0 %v414
        %v619 = vpop.f32.mrb[0].mxu0
        %v620 = vadd.f32 %v344, %v619
        %v621 = vpop.f32.mrb[0].mxu0
        %622 = vmatprep.mubr.f32.mxu0 0.0
        %623 = vmatmul.mubr.f32.gmra.mrb[0].mxu0 %v417
        %v624 = vpop.f32.mrb[0].mxu0
        %v625 = vadd.f32 %v344, %v624
        %v626 = vpop.f32.mrb[0].mxu0
        %627 = vmatprep.mubr.f32.mxu0 0.0
        %628 = vmatmul.mubr.f32.gmra.mrb[0].mxu0 %v420
        %v629 = vpop.f32.mrb[0].mxu0
        %v630 = vadd.f32 %v344, %v629
        %v631 = vpop.f32.mrb[0].mxu0
        %632 = vmatprep.mubr.f32.mxu0 0.0
        %633 = vmatmul.mubr.f32.gmra.mrb[0].mxu0 %v423
        %v634 = vpop.f32.mrb[0].mxu0
        %v635 = vadd.f32 %v344, %v634
        %v636 = vpop.f32.mrb[0].mxu0
        %637 = vmatprep.mubr.f32.mxu0 0.0
        %638 = vmatmul.mubr.f32.gmra.mrb[0].mxu0 %v426
        %v639 = vpop.f32.mrb[0].mxu0
        %v640 = vadd.f32 %v344, %v639
        %v641 = vpop.f32.mrb[0].mxu0
        %642 = vmatprep.mubr.f32.mxu0 0.0
        %643 = vmatmul.mubr.f32.gmra.mrb[0].mxu0 %v429
        %v644 = vpop.f32.mrb[0].mxu0
        %v645 = vadd.f32 %v344, %v644
        %v646 = vpop.f32.mrb[0].mxu0
        %647 = vmatprep.mubr.f32.mxu0 0.0
        %648 = vmatmul.mubr.f32.gmra.mrb[0].mxu0 %v432
        %v649 = vpop.f32.mrb[0].mxu0
        %v650 = vadd.f32 %v344, %v649
        %v651 = vpop.f32.mrb[0].mxu0
        %652 = vmatprep.mubr.f32.mxu0 0.0
        %653 = vmatmul.mubr.f32.gmra.mrb[0].mxu0 %v435
        %v654 = vpop.f32.mrb[0].mxu0
        %v655 = vadd.f32 %v344, %v654
        %v656 = vpop.f32.mrb[0].mxu0
        %657 = vmatprep.mubr.f32.mxu0 0.0
        %658 = vmatmul.mubr.f32.gmra.mrb[0].mxu0 %v438
        %v659 = vpop.f32.mrb[0].mxu0
        %v660 = vadd.f32 %v344, %v659
        %v661 = vpop.f32.mrb[0].mxu0
        %662 = vmatprep.mubr.f32.mxu0 0.0
        %663 = vmatmul.mubr.f32.gmra.mrb[0].mxu0 %v441
        %v664 = vpop.f32.mrb[0].mxu0
        %v665 = vadd.f32 %v344, %v664
        %v666 = vpop.f32.mrb[0].mxu0
        %667 = vdwg.mxu0
        %v668 = vmax.f32 %v510, 0.0
        %v669 = vmax.f32 %v515, 0.0
        %v670 = vmax.f32 %v520, 0.0
        %v671 = vmax.f32 %v525, 0.0
        %v672 = vmax.f32 %v530, 0.0
        %v673 = vmax.f32 %v535, 0.0
        %v674 = vmax.f32 %v540, 0.0
        %v675 = vmax.f32 %v545, 0.0
        %v676 = vmax.f32 %v550, 0.0
        %v677 = vmax.f32 %v555, 0.0
        %v678 = vmax.f32 %v560, 0.0
        %v679 = vmax.f32 %v565, 0.0
        %v680 = vmax.f32 %v570, 0.0
        %v681 = vmax.f32 %v575, 0.0
        %v682 = vmax.f32 %v580, 0.0
        %v683 = vmax.f32 %v585, 0.0
        %v684 = vmax.f32 %v590, 0.0
        %v685 = vmax.f32 %v595, 0.0
        %v686 = vmax.f32 %v600, 0.0
        %v687 = vmax.f32 %v605, 0.0
        %v688 = vmax.f32 %v610, 0.0
        %v689 = vmax.f32 %v615, 0.0
        %v690 = vmax.f32 %v620, 0.0
        %v691 = vmax.f32 %v625, 0.0
        %v692 = vmax.f32 %v630, 0.0
        %v693 = vmax.f32 %v635, 0.0
        %v694 = vmax.f32 %v640, 0.0
        %v695 = vmax.f32 %v645, 0.0
        %v696 = vmax.f32 %v650, 0.0
        %v697 = vmax.f32 %v655, 0.0
        %v698 = vmax.f32 %v660, 0.0
        %v699 = vmax.f32 %v665, 0.0
        %v700 = vld [vmem:[%s3] sm:$0xff]
        %v701 = vld [vmem:[%s3 + $0x8] sm:$0xff]
        %v702 = vld [vmem:[%s3 + $0x10] sm:$0xff]
        %v703 = vld [vmem:[%s3 + $0x18] sm:$0xff]
        %v704 = vld [vmem:[%s4] sm:$0x1]
        %v706 = vlaneseq
        %v707 = vshrl.u32 %v706, 7
        %v708 = vsub.s32 0, %v707
        %v709 = vrot.slane %v704, %v708
        %vm711 = vcmask 261120
        %v713 = vsel %vm711, %v668, 0
        %v716 = vsel %vm711, %v669, 0
        %v719 = vsel %vm711, %v670, 0
        %v722 = vsel %vm711, %v671, 0
        %v725 = vsel %vm711, %v672, 0
        %v728 = vsel %vm711, %v673, 0
        %v731 = vsel %vm711, %v674, 0
        %v734 = vsel %vm711, %v675, 0
        %v737 = vsel %vm711, %v676, 0
        %v740 = vsel %vm711, %v677, 0
        %v743 = vsel %vm711, %v678, 0
        %v746 = vsel %vm711, %v679, 0
        %v749 = vsel %vm711, %v680, 0
        %v752 = vsel %vm711, %v681, 0
        %v755 = vsel %vm711, %v682, 0
        %v758 = vsel %vm711, %v683, 0
        %v761 = vsel %vm711, %v684, 0
        %v764 = vsel %vm711, %v685, 0
        %v767 = vsel %vm711, %v686, 0
        %v770 = vsel %vm711, %v687, 0
        %v773 = vsel %vm711, %v688, 0
        %v776 = vsel %vm711, %v689, 0
        %v779 = vsel %vm711, %v690, 0
        %v782 = vsel %vm711, %v691, 0
        %v785 = vsel %vm711, %v692, 0
        %v788 = vsel %vm711, %v693, 0
        %v791 = vsel %vm711, %v694, 0
        %v794 = vsel %vm711, %v695, 0
        %v797 = vsel %vm711, %v696, 0
        %v800 = vsel %vm711, %v697, 0
        %v803 = vsel %vm711, %v698, 0
        %v806 = vsel %vm711, %v699, 0
        %808 = vmatprep.subr.mxu0 0.0
        %809 = vmatpush1.msra.mxu0 %v700
        %810 = vmatprep.subr.mxu0 0.0
        %811 = vmatpush1.msra.mxu0 %v701
        %812 = vmatprep.subr.mxu0 0.0
        %813 = vmatpush1.msra.mxu0 %v702
        %814 = vmatprep.subr.mxu0 0.0
        %815 = vmatpush1.msra.mxu0 %v703
        %816 = vmatprep.subr.mxu0 0.0
        %817 = vmatpush1.msra.mxu0 0.0
        %818 = vmatprep.subr.mxu0 0.0
        %819 = vmatpush1.msra.mxu0 0.0
        %820 = vmatprep.subr.mxu0 0.0
        %821 = vmatpush1.msra.mxu0 0.0
        %822 = vmatprep.subr.mxu0 0.0
        %823 = vmatpush1.msra.mxu0 0.0
        %824 = vmatprep.subr.mxu0 0.0
        %825 = vmatpush1.msra.mxu0 0.0
        %826 = vmatprep.subr.mxu0 0.0
        %827 = vmatpush1.msra.mxu0 0.0
        %828 = vmatprep.subr.mxu0 0.0
        %829 = vmatpush1.msra.mxu0 0.0
        %830 = vmatprep.subr.mxu0 0.0
        %831 = vmatpush1.msra.mxu0 0.0
        %832 = vmatprep.subr.mxu0 0.0
        %833 = vmatpush1.msra.mxu0 0.0
        %834 = vmatprep.subr.mxu0 0.0
        %835 = vmatpush1.msra.mxu0 0.0
        %836 = vmatprep.subr.mxu0 0.0
        %837 = vmatpush1.msra.mxu0 0.0
        %838 = vmatprep.subr.mxu0 0.0
        %839 = vmatpush1.msra.mxu0 0.0
        %840 = vmatprep.subr.mxu0 0.0
        %841 = vmatpush1.msra.mxu0 0.0
        %842 = vmatprep.subr.mxu0 0.0
        %843 = vmatpush1.msra.mxu0 0.0
        %844 = vmatprep.subr.mxu0 0.0
        %845 = vmatpush1.msra.mxu0 0.0
        %846 = vmatprep.subr.mxu0 0.0
        %847 = vmatpush1.msra.mxu0 0.0
        %848 = vmatprep.subr.mxu0 0.0
        %849 = vmatpush1.msra.mxu0 0.0
        %850 = vmatprep.subr.mxu0 0.0
        %851 = vmatpush1.msra.mxu0 0.0
        %852 = vmatprep.subr.mxu0 0.0
        %853 = vmatpush1.msra.mxu0 0.0
        %854 = vmatprep.subr.mxu0 0.0
        %855 = vmatpush1.msra.mxu0 0.0
        %856 = vmatprep.subr.mxu0 0.0
        %857 = vmatpush1.msra.mxu0 0.0
        %858 = vmatprep.subr.mxu0 0.0
        %859 = vmatpush1.msra.mxu0 0.0
        %860 = vmatprep.subr.mxu0 0.0
        %861 = vmatpush1.msra.mxu0 0.0
        %862 = vmatprep.subr.mxu0 0.0
        %863 = vmatpush1.msra.mxu0 0.0
        %864 = vmatprep.subr.mxu0 0.0
        %865 = vmatpush1.msra.mxu0 0.0
        %866 = vmatprep.subr.mxu0 0.0
        %867 = vmatpush1.msra.mxu0 0.0
        %868 = vmatprep.subr.mxu0 0.0
        %869 = vmatpush1.msra.mxu0 0.0
        %870 = vmatprep.subr.mxu0 0.0
        %871 = vmatpush1.msra.mxu0 0.0
        %872 = vmatprep.mubr.f32.mxu0 0.0
        %873 = vmatmul.mubr.f32.gmra.mrb[0].mxu0 %v713
        %v874 = vpop.f32.mrb[0].mxu0
        %v875 = vadd.f32 %v709, %v874
        %v876 = vpop.f32.mrb[0].mxu0
        %877 = vmatprep.mubr.f32.mxu0 0.0
        %878 = vmatmul.mubr.f32.gmra.mrb[0].mxu0 %v716
        %v879 = vpop.f32.mrb[0].mxu0
        %v880 = vadd.f32 %v709, %v879
        %v881 = vpop.f32.mrb[0].mxu0
        %882 = vmatprep.mubr.f32.mxu0 0.0
        %883 = vmatmul.mubr.f32.gmra.mrb[0].mxu0 %v719
        %v884 = vpop.f32.mrb[0].mxu0
        %v885 = vadd.f32 %v709, %v884
        %v886 = vpop.f32.mrb[0].mxu0
        %887 = vmatprep.mubr.f32.mxu0 0.0
        %888 = vmatmul.mubr.f32.gmra.mrb[0].mxu0 %v722
        %v889 = vpop.f32.mrb[0].mxu0
        %v890 = vadd.f32 %v709, %v889
        %v891 = vpop.f32.mrb[0].mxu0
        %892 = vmatprep.mubr.f32.mxu0 0.0
        %893 = vmatmul.mubr.f32.gmra.mrb[0].mxu0 %v725
        %v894 = vpop.f32.mrb[0].mxu0
        %v895 = vadd.f32 %v709, %v894
        %v896 = vpop.f32.mrb[0].mxu0
        %897 = vmatprep.mubr.f32.mxu0 0.0
        %898 = vmatmul.mubr.f32.gmra.mrb[0].mxu0 %v728
        %v899 = vpop.f32.mrb[0].mxu0
        %v900 = vadd.f32 %v709, %v899
        %v901 = vpop.f32.mrb[0].mxu0
        %902 = vmatprep.mubr.f32.mxu0 0.0
        %903 = vmatmul.mubr.f32.gmra.mrb[0].mxu0 %v731
        %v904 = vpop.f32.mrb[0].mxu0
        %v905 = vadd.f32 %v709, %v904
        %v906 = vpop.f32.mrb[0].mxu0
        %907 = vmatprep.mubr.f32.mxu0 0.0
        %908 = vmatmul.mubr.f32.gmra.mrb[0].mxu0 %v734
        %v909 = vpop.f32.mrb[0].mxu0
        %v910 = vadd.f32 %v709, %v909
        %v911 = vpop.f32.mrb[0].mxu0
        %912 = vmatprep.mubr.f32.mxu0 0.0
        %913 = vmatmul.mubr.f32.gmra.mrb[0].mxu0 %v737
        %v914 = vpop.f32.mrb[0].mxu0
        %v915 = vadd.f32 %v709, %v914
        %v916 = vpop.f32.mrb[0].mxu0
        %917 = vmatprep.mubr.f32.mxu0 0.0
        %918 = vmatmul.mubr.f32.gmra.mrb[0].mxu0 %v740
        %v919 = vpop.f32.mrb[0].mxu0
        %v920 = vadd.f32 %v709, %v919
        %v921 = vpop.f32.mrb[0].mxu0
        %922 = vmatprep.mubr.f32.mxu0 0.0
        %923 = vmatmul.mubr.f32.gmra.mrb[0].mxu0 %v743
        %v924 = vpop.f32.mrb[0].mxu0
        %v925 = vadd.f32 %v709, %v924
        %v926 = vpop.f32.mrb[0].mxu0
        %927 = vmatprep.mubr.f32.mxu0 0.0
        %928 = vmatmul.mubr.f32.gmra.mrb[0].mxu0 %v746
        %v929 = vpop.f32.mrb[0].mxu0
        %v930 = vadd.f32 %v709, %v929
        %v931 = vpop.f32.mrb[0].mxu0
        %932 = vmatprep.mubr.f32.mxu0 0.0
        %933 = vmatmul.mubr.f32.gmra.mrb[0].mxu0 %v749
        %v934 = vpop.f32.mrb[0].mxu0
        %v935 = vadd.f32 %v709, %v934
        %v936 = vpop.f32.mrb[0].mxu0
        %937 = vmatprep.mubr.f32.mxu0 0.0
        %938 = vmatmul.mubr.f32.gmra.mrb[0].mxu0 %v752
        %v939 = vpop.f32.mrb[0].mxu0
        %v940 = vadd.f32 %v709, %v939
        %v941 = vpop.f32.mrb[0].mxu0
        %942 = vmatprep.mubr.f32.mxu0 0.0
        %943 = vmatmul.mubr.f32.gmra.mrb[0].mxu0 %v755
        %v944 = vpop.f32.mrb[0].mxu0
        %v945 = vadd.f32 %v709, %v944
        %v946 = vpop.f32.mrb[0].mxu0
        %947 = vmatprep.mubr.f32.mxu0 0.0
        %948 = vmatmul.mubr.f32.gmra.mrb[0].mxu0 %v758
        %v949 = vpop.f32.mrb[0].mxu0
        %v950 = vadd.f32 %v709, %v949
        %v951 = vpop.f32.mrb[0].mxu0
        %952 = vmatprep.mubr.f32.mxu0 0.0
        %953 = vmatmul.mubr.f32.gmra.mrb[0].mxu0 %v761
        %v954 = vpop.f32.mrb[0].mxu0
        %v955 = vadd.f32 %v709, %v954
        %v956 = vpop.f32.mrb[0].mxu0
        %957 = vmatprep.mubr.f32.mxu0 0.0
        %958 = vmatmul.mubr.f32.gmra.mrb[0].mxu0 %v764
        %v959 = vpop.f32.mrb[0].mxu0
        %v960 = vadd.f32 %v709, %v959
        %v961 = vpop.f32.mrb[0].mxu0
        %962 = vmatprep.mubr.f32.mxu0 0.0
        %963 = vmatmul.mubr.f32.gmra.mrb[0].mxu0 %v767
        %v964 = vpop.f32.mrb[0].mxu0
        %v965 = vadd.f32 %v709, %v964
        %v966 = vpop.f32.mrb[0].mxu0
        %967 = vmatprep.mubr.f32.mxu0 0.0
        %968 = vmatmul.mubr.f32.gmra.mrb[0].mxu0 %v770
        %v969 = vpop.f32.mrb[0].mxu0
        %v970 = vadd.f32 %v709, %v969
        %v971 = vpop.f32.mrb[0].mxu0
        %972 = vmatprep.mubr.f32.mxu0 0.0
        %973 = vmatmul.mubr.f32.gmra.mrb[0].mxu0 %v773
        %v974 = vpop.f32.mrb[0].mxu0
        %v975 = vadd.f32 %v709, %v974
        %v976 = vpop.f32.mrb[0].mxu0
        %977 = vmatprep.mubr.f32.mxu0 0.0
        %978 = vmatmul.mubr.f32.gmra.mrb[0].mxu0 %v776
        %v979 = vpop.f32.mrb[0].mxu0
        %v980 = vadd.f32 %v709, %v979
        %v981 = vpop.f32.mrb[0].mxu0
        %982 = vmatprep.mubr.f32.mxu0 0.0
        %983 = vmatmul.mubr.f32.gmra.mrb[0].mxu0 %v779
        %v984 = vpop.f32.mrb[0].mxu0
        %v985 = vadd.f32 %v709, %v984
        %v986 = vpop.f32.mrb[0].mxu0
        %987 = vmatprep.mubr.f32.mxu0 0.0
        %988 = vmatmul.mubr.f32.gmra.mrb[0].mxu0 %v782
        %v989 = vpop.f32.mrb[0].mxu0
        %v990 = vadd.f32 %v709, %v989
        %v991 = vpop.f32.mrb[0].mxu0
        %992 = vmatprep.mubr.f32.mxu0 0.0
        %993 = vmatmul.mubr.f32.gmra.mrb[0].mxu0 %v785
        %v994 = vpop.f32.mrb[0].mxu0
        %v995 = vadd.f32 %v709, %v994
        %v996 = vpop.f32.mrb[0].mxu0
        %997 = vmatprep.mubr.f32.mxu0 0.0
        %998 = vmatmul.mubr.f32.gmra.mrb[0].mxu0 %v788
        %v999 = vpop.f32.mrb[0].mxu0
        %v1000 = vadd.f32 %v709, %v999
        %v1001 = vpop.f32.mrb[0].mxu0
        %1002 = vmatprep.mubr.f32.mxu0 0.0
        %1003 = vmatmul.mubr.f32.gmra.mrb[0].mxu0 %v791
        %v1004 = vpop.f32.mrb[0].mxu0
        %v1005 = vadd.f32 %v709, %v1004
        %v1006 = vpop.f32.mrb[0].mxu0
        %1007 = vmatprep.mubr.f32.mxu0 0.0
        %1008 = vmatmul.mubr.f32.gmra.mrb[0].mxu0 %v794
        %v1009 = vpop.f32.mrb[0].mxu0
        %v1010 = vadd.f32 %v709, %v1009
        %v1011 = vpop.f32.mrb[0].mxu0
        %1012 = vmatprep.mubr.f32.mxu0 0.0
        %1013 = vmatmul.mubr.f32.gmra.mrb[0].mxu0 %v797
        %v1014 = vpop.f32.mrb[0].mxu0
        %v1015 = vadd.f32 %v709, %v1014
        %v1016 = vpop.f32.mrb[0].mxu0
        %1017 = vmatprep.mubr.f32.mxu0 0.0
        %1018 = vmatmul.mubr.f32.gmra.mrb[0].mxu0 %v800
        %v1019 = vpop.f32.mrb[0].mxu0
        %v1020 = vadd.f32 %v709, %v1019
        %v1021 = vpop.f32.mrb[0].mxu0
        %1022 = vmatprep.mubr.f32.mxu0 0.0
        %1023 = vmatmul.mubr.f32.gmra.mrb[0].mxu0 %v803
        %v1024 = vpop.f32.mrb[0].mxu0
        %v1025 = vadd.f32 %v709, %v1024
        %v1026 = vpop.f32.mrb[0].mxu0
        %1027 = vmatprep.mubr.f32.mxu0 0.0
        %1028 = vmatmul.mubr.f32.gmra.mrb[0].mxu0 %v806
        %v1029 = vpop.f32.mrb[0].mxu0
        %v1030 = vadd.f32 %v709, %v1029
        %v1031 = vpop.f32.mrb[0].mxu0
        %1032 = vdwg.mxu0
        %v1033 = vmax.f32 %v875, 0.0
        %v1034 = vmax.f32 %v880, 0.0
        %v1035 = vmax.f32 %v885, 0.0
        %v1036 = vmax.f32 %v890, 0.0
        %v1037 = vmax.f32 %v895, 0.0
        %v1038 = vmax.f32 %v900, 0.0
        %v1039 = vmax.f32 %v905, 0.0
        %v1040 = vmax.f32 %v910, 0.0
        %v1041 = vmax.f32 %v915, 0.0
        %v1042 = vmax.f32 %v920, 0.0
        %v1043 = vmax.f32 %v925, 0.0
        %v1044 = vmax.f32 %v930, 0.0
        %v1045 = vmax.f32 %v935, 0.0
        %v1046 = vmax.f32 %v940, 0.0
        %v1047 = vmax.f32 %v945, 0.0
        %v1048 = vmax.f32 %v950, 0.0
        %v1049 = vmax.f32 %v955, 0.0
        %v1050 = vmax.f32 %v960, 0.0
        %v1051 = vmax.f32 %v965, 0.0
        %v1052 = vmax.f32 %v970, 0.0
        %v1053 = vmax.f32 %v975, 0.0
        %v1054 = vmax.f32 %v980, 0.0
        %v1055 = vmax.f32 %v985, 0.0
        %v1056 = vmax.f32 %v990, 0.0
        %v1057 = vmax.f32 %v995, 0.0
        %v1058 = vmax.f32 %v1000, 0.0
        %v1059 = vmax.f32 %v1005, 0.0
        %v1060 = vmax.f32 %v1010, 0.0
        %v1061 = vmax.f32 %v1015, 0.0
        %v1062 = vmax.f32 %v1020, 0.0
        %v1063 = vmax.f32 %v1025, 0.0
        %v1064 = vmax.f32 %v1030, 0.0
        %v1065 = vld [vmem:[%s5] sm:$0x1]
        %v1067 = vlaneseq
        %v1068 = vshrl.u32 %v1067, 7
        %v1069 = vsub.s32 0, %v1068
        %v1070 = vrot.slane %v1065, %v1069
        %v1072 = vmul.f32 %v1033, %v1070
        %v1073 = vmul.f32 %v1034, %v1070
        %v1074 = vmul.f32 %v1035, %v1070
        %v1075 = vmul.f32 %v1036, %v1070
        %v1076 = vmul.f32 %v1037, %v1070
        %v1077 = vmul.f32 %v1038, %v1070
        %v1078 = vmul.f32 %v1039, %v1070
        %v1079 = vmul.f32 %v1040, %v1070
        %v1080 = vmul.f32 %v1041, %v1070
        %v1081 = vmul.f32 %v1042, %v1070
        %v1082 = vmul.f32 %v1043, %v1070
        %v1083 = vmul.f32 %v1044, %v1070
        %v1084 = vmul.f32 %v1045, %v1070
        %v1085 = vmul.f32 %v1046, %v1070
        %v1086 = vmul.f32 %v1047, %v1070
        %v1087 = vmul.f32 %v1048, %v1070
        %v1088 = vmul.f32 %v1049, %v1070
        %v1089 = vmul.f32 %v1050, %v1070
        %v1090 = vmul.f32 %v1051, %v1070
        %v1091 = vmul.f32 %v1052, %v1070
        %v1092 = vmul.f32 %v1053, %v1070
        %v1093 = vmul.f32 %v1054, %v1070
        %v1094 = vmul.f32 %v1055, %v1070
        %v1095 = vmul.f32 %v1056, %v1070
        %v1096 = vmul.f32 %v1057, %v1070
        %v1097 = vmul.f32 %v1058, %v1070
        %v1098 = vmul.f32 %v1059, %v1070
        %v1099 = vmul.f32 %v1060, %v1070
        %v1100 = vmul.f32 %v1061, %v1070
        %v1101 = vmul.f32 %v1062, %v1070
        %v1102 = vmul.f32 %v1063, %v1070
        %v1103 = vmul.f32 %v1064, %v1070
        %1104 = vxpose.xlu0.b32.start [1/16] %v1072, 128
        %1105 = vxpose.xlu0.b32.cont [2/16] %v1073, 128
        %1106 = vxpose.xlu0.b32.cont [3/16] %v1074, 128
        %1107 = vxpose.xlu0.b32.cont [4/16] %v1075, 128
        %1108 = vxpose.xlu0.b32.cont [5/16] %v1076, 128
        %1109 = vxpose.xlu0.b32.cont [6/16] %v1077, 128
        %1110 = vxpose.xlu0.b32.cont [7/16] %v1078, 128
        %1111 = vxpose.xlu0.b32.cont [8/16] %v1079, 128
        %1112 = vxpose.xlu0.b32.cont [9/16] %v1080, 128
        %1113 = vxpose.xlu0.b32.cont [10/16] %v1081, 128
        %1114 = vxpose.xlu0.b32.cont [11/16] %v1082, 128
        %1115 = vxpose.xlu0.b32.cont [12/16] %v1083, 128
        %1116 = vxpose.xlu0.b32.cont [13/16] %v1084, 128
        %1117 = vxpose.xlu0.b32.cont [14/16] %v1085, 128
        %1118 = vxpose.xlu0.b32.cont [15/16] %v1086, 128
        %1119 = vxpose.xlu0.b32.end [16/16] %v1087, 128
        %v1120 = vpop.trf.xlu0
        %v1121 = vpop.trf.xlu0
        %v1122 = vpop.trf.xlu0
        %v1123 = vpop.trf.xlu0
        %v1124 = vpop.trf.xlu0
        %v1125 = vpop.trf.xlu0
        %v1126 = vpop.trf.xlu0
        %v1127 = vpop.trf.xlu0
        %v1128 = vpop.trf.xlu0
        %v1129 = vpop.trf.xlu0
        %v1130 = vpop.trf.xlu0
        %v1131 = vpop.trf.xlu0
        %v1132 = vpop.trf.xlu0
        %v1133 = vpop.trf.xlu0
        %v1134 = vpop.trf.xlu0
        %v1135 = vpop.trf.xlu0
        %1136 = vxpose.xlu0.b32.start [1/16] %v1088, 128
        %1137 = vxpose.xlu0.b32.cont [2/16] %v1089, 128
        %1138 = vxpose.xlu0.b32.cont [3/16] %v1090, 128
        %1139 = vxpose.xlu0.b32.cont [4/16] %v1091, 128
        %1140 = vxpose.xlu0.b32.cont [5/16] %v1092, 128
        %1141 = vxpose.xlu0.b32.cont [6/16] %v1093, 128
        %1142 = vxpose.xlu0.b32.cont [7/16] %v1094, 128
        %1143 = vxpose.xlu0.b32.cont [8/16] %v1095, 128
        %1144 = vxpose.xlu0.b32.cont [9/16] %v1096, 128
        %1145 = vxpose.xlu0.b32.cont [10/16] %v1097, 128
        %1146 = vxpose.xlu0.b32.cont [11/16] %v1098, 128
        %1147 = vxpose.xlu0.b32.cont [12/16] %v1099, 128
        %1148 = vxpose.xlu0.b32.cont [13/16] %v1100, 128
        %1149 = vxpose.xlu0.b32.cont [14/16] %v1101, 128
        %1150 = vxpose.xlu0.b32.cont [15/16] %v1102, 128
        %1151 = vxpose.xlu0.b32.end [16/16] %v1103, 128
        %v1152 = vpop.trf.xlu0
        %v1153 = vpop.trf.xlu0
        %v1154 = vpop.trf.xlu0
        %v1155 = vpop.trf.xlu0
        %v1156 = vpop.trf.xlu0
        %v1157 = vpop.trf.xlu0
        %v1158 = vpop.trf.xlu0
        %v1159 = vpop.trf.xlu0
        %v1160 = vpop.trf.xlu0
        %v1161 = vpop.trf.xlu0
        %v1162 = vpop.trf.xlu0
        %v1163 = vpop.trf.xlu0
        %v1164 = vpop.trf.xlu0
        %v1165 = vpop.trf.xlu0
        %v1166 = vpop.trf.xlu0
        %v1167 = vpop.trf.xlu0
        %v1168 = vadd.f32 %v1120, %v1121
        %v1169 = vadd.f32 %v1168, %v1122
        %v1170 = vadd.f32 %v1169, %v1123
        %v1171 = vadd.f32 %v1170, %v1124
        %v1172 = vadd.f32 %v1171, %v1125
        %v1173 = vadd.f32 %v1172, %v1126
        %v1174 = vadd.f32 %v1173, %v1127
        %v1175 = vadd.f32 %v1174, %v1128
        %v1176 = vadd.f32 %v1175, %v1129
        %v1177 = vadd.f32 %v1176, %v1130
        %v1178 = vadd.f32 %v1177, %v1131
        %v1179 = vadd.f32 %v1178, %v1132
        %v1180 = vadd.f32 %v1179, %v1133
        %v1181 = vadd.f32 %v1180, %v1134
        %v1182 = vadd.f32 %v1181, %v1135
        %v1183 = vrot.slane %v1182, 4
        %v1184 = vadd.f32 %v1182, %v1183
        %v1185 = vrot.slane %v1184, 2
        %v1186 = vadd.f32 %v1184, %v1185
        %v1187 = vrot.slane %v1186, 1
        %v1188 = vadd.f32 %v1186, %v1187
        %v1189 = vadd.f32 %v1152, %v1153
        %v1190 = vadd.f32 %v1189, %v1154
        %v1191 = vadd.f32 %v1190, %v1155
        %v1192 = vadd.f32 %v1191, %v1156
        %v1193 = vadd.f32 %v1192, %v1157
        %v1194 = vadd.f32 %v1193, %v1158
        %v1195 = vadd.f32 %v1194, %v1159
        %v1196 = vadd.f32 %v1195, %v1160
        %v1197 = vadd.f32 %v1196, %v1161
        %v1198 = vadd.f32 %v1197, %v1162
        %v1199 = vadd.f32 %v1198, %v1163
        %v1200 = vadd.f32 %v1199, %v1164
        %v1201 = vadd.f32 %v1200, %v1165
        %v1202 = vadd.f32 %v1201, %v1166
        %v1203 = vadd.f32 %v1202, %v1167
        %v1204 = vrot.slane %v1203, 4
        %v1205 = vadd.f32 %v1203, %v1204
        %v1206 = vrot.slane %v1205, 2
        %v1207 = vadd.f32 %v1205, %v1206
        %v1208 = vrot.slane %v1207, 1
        %v1209 = vadd.f32 %v1207, %v1208
        %s1210 = sld [smem:[#allocation2]]
        %v1211 = vstv %s1210
        %v1212 = vadd.f32 %v1188, %v1211
        %v1213 = vadd.f32 %v1209, %v1211
        %v1216 = vcombine.low %v1212, %v1213
        %v1218 = vunpack.c.l.s4 1966171168
        %v1219 = vunpack.c.0.s8 %v1218
        %v1220 = vlaneseq
        %v1221 = vshrl.u32 %v1220, 7
        %v1222 = vsub.s32 %v1219, %v1221
        %v1223 = vrot.slane %v1216, %v1222
        %v1225 = vunpack.c.l.s4 1966171168
        %v1226 = vunpack.c.0.s8 %v1225
        %v1227 = vlaneseq
        %v1228 = vshrl.u32 %v1227, 7
        %v1229 = vsub.s32 %v1226, %v1228
        %v1230 = vrot.slane %v1223, %v1229
        %v1232 = vlaneseq
        %vm1233 = vcmp.ge.s32.totalorder %v1232, 0
        %vm1234 = vcmp.lt.s32.totalorder %v1232, 256
        %vm1235 = vmand %vm1233, %vm1234
        %1236 = vst.msk [vmem:[%s285] sm:$0x3] %vm1235, %v1230
        %s1237 = sand.u32 %s182, 1
        %s1238 = scalar_lea.sflag [#allocation4], %s1237
        %s1239 = sand.u32 %s182, 1
        %s1240 = smul.addr %s1239, 2
        %s1241 = scalar_lea.vmem [#allocation3], %s1240
        // Predicated region
        $region49: #{tpu_custom_call.1} parent=47 // pred_check
          %p1242 = pneg %p192
        $region50: #{tpu_custom_call.1} parent=47 // pred_check_branch
          %1244 = sbr.rel (%p1242) target = $region52
        $region51: #{tpu_custom_call.1} parent=47 // pred_region
          %s1245 = smul.u32 2, %s22
          %s1246 = ssub.s32 3, %s1245
          %p1247 = scmp.lt.s32.totalorder %s1246, 2
          %s1248 = scalar_select %p1247, %s1246, 2
          %s1249 = smul.u32 16, %s1248
          %s1251 = ssub.s32 32, %s1249
          %1252 = vsyncadd %s1238, %s1251
          %p1253 = scmp.ne.s32.totalorder 0, %s1249
          %s1254 = smul.addr %s1245, 16
          %s1255 = scalar_lea.hbm %s7, %s1254
          %s1256 = sshll.u32 %s1248, 4
          %s1257 = sshll.u32 %s1241, 4
          %s1258 = int_to_ptr.vmem [resolvable:$true] %s1257
          %1260 = dma.vmem_to_hbm [thread:$0]  (%p1253), %s1258, %s1256, %s1255, %s1238
        $region52: #{tpu_custom_call.1} parent=47 // pred_fallthru
          _
      $region48: #{tpu_custom_call.1} parent=5 // pred_fallthru
        _
      %p1261 = scmp.le.s32.totalorder 2, %s17
      // Predicated region
      $region53: #{tpu_custom_call.1} parent=5 // pred_check
        %p1262 = pneg %p1261
      $region54: #{tpu_custom_call.1} parent=5 // pred_check_branch
        %1264 = sbr.rel (%p1262) target = $region56
      $region55: #{tpu_custom_call.1} parent=5 // pred_region
        %s1265 = ssub.s32 %s17, 2
        // Predicated region
        $region57: #{tpu_custom_call.1} parent=55 // pred_check
          %p1266 = pneg %p198
        $region58: #{tpu_custom_call.1} parent=55 // pred_check_branch
          %1268 = sbr.rel (%p1266) target = $region60
        $region59: #{tpu_custom_call.1} parent=55 // pred_region
          %s1269 = sand.u32 %s183, 1
          %s1270 = scalar_lea.sflag [#allocation4], %s1269
          %s1271 = sand.u32 %s183, 1
          %s1272 = smul.addr %s1271, 2
          %s1273 = scalar_lea.vmem [#allocation3], %s1272
          %1274 = dma.done %s1270, 32
        $region60: #{tpu_custom_call.1} parent=55 // pred_fallthru
          _
      $region56: #{tpu_custom_call.1} parent=5 // pred_fallthru
        _
    $region6: #{tpu_custom_call.1} parent=1 // loop_footer
      %s21 = sadd.s32 1, %s17
    $region7: #{tpu_custom_call.1} parent=1 // loop_footer_branch
      %16 = sbr.rel target = $region3
    $region8: #{tpu_custom_call.1} parent=1 // loop_exit
      _
    %1275 = vsyncpa [#allocation4], 1
    %s1276 = scalar_lea.sflag [#allocation4], 1
    %1277 = vsyncpa %s1276, 1

</llo_original>
